<compile_context>
chip_gen: v6e
topology: v6e:2x2x1
jax: 0.10.0
libtpu: 0.0.40
codegen_flags: <defaults>
</compile_context>

<pallas_src>
import jax
import jax.numpy as jnp
from jax import lax
from jax.experimental import pallas as pl
from jax.experimental.pallas import tpu as pltpu

# ---- model dims (small, consistent with the PyTorch forward) ----
B = 2          # batch
C_IN = 4       # image channels
H = W = 16     # spatial
HW = H * W     # n_regions = 256
L = 8          # caption length
VOCAB = 100
DIM_W = 16     # word embedding dim
DIM_T = 32     # text representation dim
DIM_V = 32     # image feature dim (img_enc output channels)
DIM_Z = 32     # fused representation dim
N_CLS = 8      # classifier output dim

LANES = 128    # TPU lane width


def _align8(x):
    return (x + 7) & ~7


# ---- packed-parameter slab layout (all row starts 8-aligned) ----
R_WBLK = 0                               # block-diag (img -> [values|alpha])^T
R_ALPHA = B * DIM_Z                      # 64: alpha-logit rows (one per batch)
_ROWS_F = _align8(B * DIM_Z + B)         # 72: padded fused-row count
R_WTZ = _ROWS_F                          # 72: Wt @ Wvt       (DIM_W, DIM_Z)
R_WC = _align8(R_WTZ + DIM_W)            # 88: Wc, padded to 128 lanes
R_BIAS = _align8(R_WC + DIM_Z)           # 120: row 0 = b_z, row 1 = bc (padded)
PACK_ROWS = _align8(R_BIAS + 2)          # 128
PACK_COLS = LANES                        # 128


def itmbf_kernel(wsum_ref, x_ref, wpk_ref, out_ref):
    # wsum_ref: (B, DIM_W)         pre-summed word embeddings (sum over L tokens)
    # x_ref:    (B*C_IN, HW)       image regions, HW on the 128-lane axis
    # wpk_ref:  (PACK_ROWS, 128)   packed/folded weights (one DMA)
    # out_ref:  (B, 128)           logits in columns [0, N_CLS), zeros elsewhere

    # --- static, 8-aligned parameter views ---
    w_blk = wpk_ref[R_WBLK:R_WBLK + _ROWS_F, 0:B * C_IN]   # (72, 8) block-diag
    w_tz = wpk_ref[R_WTZ:R_WTZ + DIM_W, 0:DIM_Z]           # (16, 32)
    w_c = wpk_ref[R_WC:R_WC + DIM_Z, :]                    # (32, 128), cols >= N_CLS are 0
    bias = wpk_ref[R_BIAS:R_BIAS + 2, :]                   # (2, 128)
    b_z = bias[0:1, 0:DIM_Z]                               # (1, 32)
    b_c = bias[1:2, :]                                     # (1, 128), cols >= N_CLS are 0

    # --- image path: 1x1 conv + both fusion heads, both batches, one K=8 matmul.
    #     Rows [0, B*DIM_Z) are per-batch value rows, rows [R_ALPHA, R_ALPHA+B)
    #     are the per-batch attention-logit rows.  HW stays on lanes. ---
    fused = jnp.dot(w_blk, x_ref[...], preferred_element_type=jnp.float32)   # (72, 256)
    values = fused[0:B * DIM_Z, :]                      # (64, 256)
    alpha = fused[R_ALPHA:R_ALPHA + B, :]               # (2, 256)
    # (per-batch text/bias terms dropped from alpha: softmax is shift-invariant)

    # --- batched lane-dense softmax over regions ---
    a_max = jnp.max(alpha, axis=-1, keepdims=True)      # (B, 1)
    a_exp = jnp.exp(alpha - a_max)                      # (B, 256)
    a_sum = jnp.sum(a_exp, axis=-1, keepdims=True)      # (B, 1)

    # --- attention-weighted region sum, both batches in one NT matmul:
    #     P[b, b2*DIM_Z + j] = sum_r a_exp[b, r] * values[b2*DIM_Z + j, r] ---
    p_all = lax.dot_general(a_exp, values, (((1,), (1,)), ((), ())),
                            preferred_element_type=jnp.float32)   # (B, B*DIM_Z)
    rows = lax.broadcasted_iota(jnp.int32, (B, DIM_Z), 0)
    z_num = p_all[:, 0:DIM_Z]
    for b in range(1, B):                                # vreg-level diag-block select
        z_num = jnp.where(rows == b, p_all[:, b * DIM_Z:(b + 1) * DIM_Z], z_num)

    # --- text path + hoisted per-batch constants, added AFTER the reduction
    #     (exact: softmax weights sum to 1) ---
    z_const = jnp.dot(wsum_ref[...], w_tz, preferred_element_type=jnp.float32) + b_z
    # NOTE: approx reciprocal (EUP) is the only deviation from exact division;
    # it only scales the data-dependent part, the constant stays exact.
    z = z_num * pl.reciprocal(a_sum, approx=True) + z_const      # (B, DIM_Z)

    # --- classifier, lane-dense full-view store ---
    out_ref[...] = jnp.dot(z, w_c, preferred_element_type=jnp.float32) + b_c


def pack_params(p):
    """One-off exact algebraic folding + packing into a single (128, 128) slab.

    Runs once at init (plain JAX / XLA), NOT inside the forward.
    """
    w_img_v = p["Wimg"] @ p["Wvv"]                        # (C_IN, DIM_Z)
    w_img_a = p["Wimg"] @ p["Wav"]                        # (C_IN, 1)
    w_tz = p["Wt"] @ p["Wvt"]                             # (DIM_W, DIM_Z)
    b_z = L * p["bt"] @ p["Wvt"] + p["bv"] + p["bimg"] @ p["Wvv"]   # (1, DIM_Z)

    wpack = jnp.zeros((PACK_ROWS, PACK_COLS), jnp.float32)
    # Block-diagonal, transposed: fused rows on sublanes, input channels on lanes.
    for b in range(B):
        wpack = wpack.at[b * DIM_Z:(b + 1) * DIM_Z, b * C_IN:(b + 1) * C_IN].set(w_img_v.T)
        wpack = wpack.at[R_ALPHA + b, b * C_IN:(b + 1) * C_IN].set(w_img_a[:, 0])
    wpack = wpack.at[R_WTZ:R_WTZ + DIM_W, 0:DIM_Z].set(w_tz)
    wpack = wpack.at[R_WC:R_WC + DIM_Z, 0:N_CLS].set(p["Wc"])
    wpack = wpack.at[R_BIAS, 0:DIM_Z].set(b_z[0])
    wpack = wpack.at[R_BIAS + 1, 0:N_CLS].set(p["bc"][0])
    return wpack


def itmbf_forward(img, caption, emb_table, wpack):
    """img: (B, C_IN, H, W) float32 NCHW; caption: (B, L) int32; wpack: pre-packed slab."""
    # glue: embedding gather + token sum (the sum commutes with the folded text linear)
    # TODO(synk): embedding-table gather stays in plain JAX; a Pallas DMA-gather is
    # not worthwhile at (2, 8) lookups.
    w_sum = emb_table[caption].sum(axis=1)                 # (B, DIM_W)
    # glue: NCHW is already HW-contiguous per (batch, channel) -> pure view, no transpose
    x_slab = img.reshape(B * C_IN, HW)                     # (8, 256)

    vmem = pl.BlockSpec(memory_space=pltpu.MemorySpace.VMEM)
    out = pl.pallas_call(
        itmbf_kernel,
        out_shape=jax.ShapeDtypeStruct((B, LANES), jnp.float32),
        in_specs=[vmem, vmem, vmem],
        out_specs=vmem,
    )(w_sum, x_slab, wpack)
    return {"logits": out[:, :N_CLS]}                      # (B, N_CLS)


itmbf_forward_jit = jax.jit(itmbf_forward)


def init_params(key):
    ks = jax.random.split(key, 16)
    s = 0.05
    return {
        "emb_table": s * jax.random.normal(ks[0], (VOCAB, DIM_W), jnp.float32),
        "Wt":   s * jax.random.normal(ks[1], (DIM_W, DIM_T), jnp.float32),
        "bt":   s * jax.random.normal(ks[2], (1, DIM_T), jnp.float32),
        "Wimg": s * jax.random.normal(ks[3], (C_IN, DIM_V), jnp.float32),
        "bimg": s * jax.random.normal(ks[4], (1, DIM_V), jnp.float32),
        "Wat":  s * jax.random.normal(ks[5], (DIM_T, 1), jnp.float32),
        "Wav":  s * jax.random.normal(ks[6], (DIM_V, 1), jnp.float32),
        "ba":   s * jax.random.normal(ks[7], (1, 1), jnp.float32),
        "Wvt":  s * jax.random.normal(ks[8], (DIM_T, DIM_Z), jnp.float32),
        "Wvv":  s * jax.random.normal(ks[9], (DIM_V, DIM_Z), jnp.float32),
        "bv":   s * jax.random.normal(ks[10], (1, DIM_Z), jnp.float32),
        "Wc":   s * jax.random.normal(ks[11], (DIM_Z, N_CLS), jnp.float32),
        "bc":   s * jax.random.normal(ks[12], (1, N_CLS), jnp.float32),
    }


def reference_forward(img, caption, p):
    """Pure-JAX reference mirroring the PyTorch forward semantics (unfolded params)."""
    w_emb = p["emb_table"][caption]                              # (B,L,DIM_W)
    t_emb = jnp.einsum("blw,wt->blt", w_emb, p["Wt"]) + p["bt"]  # (B,L,DIM_T)
    t = t_emb.sum(axis=1)                                        # (B,DIM_T)
    # img_enc (1x1 conv) then Attention's view+permute -> (B,HW,DIM_V)
    v = jnp.einsum("bchw,cd->bhwd", img, p["Wimg"]).reshape(B, HW, DIM_V) + p["bimg"]
    alpha = (jnp.einsum("brd,do->bro", v, p["Wav"])
             + (t @ p["Wat"])[:, None, :] + p["ba"])             # (B,HW,1)
    values = (jnp.einsum("brd,do->bro", v, p["Wvv"])
              + (t @ p["Wvt"])[:, None, :] + p["bv"])            # (B,HW,DIM_Z)
    alpha = jax.nn.softmax(alpha, axis=1)
    z = (alpha * values).sum(axis=1)                             # (B,DIM_Z)
    return z @ p["Wc"] + p["bc"]


if __name__ == "__main__":
    key = jax.random.PRNGKey(0)
    k_img, k_cap, k_par = jax.random.split(key, 3)

    img = jax.random.normal(k_img, (B, C_IN, H, W), jnp.float32)       # NCHW
    caption = jax.random.randint(k_cap, (B, L), 0, VOCAB, jnp.int32)
    params = init_params(k_par)

    # parameter folding/packing runs once at init, not per forward
    wpack = jax.block_until_ready(pack_params(params))

    out = itmbf_forward_jit(img, caption, params["emb_table"], wpack)
    logits = jax.block_until_ready(out["logits"])

    ref = reference_forward(img, caption, params)
    assert logits.shape == (B, N_CLS)
    assert jnp.allclose(logits, ref, atol=1e-4, rtol=1e-4), "mismatch vs reference"
    print("KERNEL_OK")
</pallas_src>

<mosaic_0001>
module attributes {stable_mosaic.version = 11 : i64} {
  func.func @itmbf_kernel(%arg0: memref<2x16xf32, #tpu.memory_space<vmem>>, %arg1: memref<8x256xf32, #tpu.memory_space<vmem>>, %arg2: memref<128x128xf32, #tpu.memory_space<vmem>>, %arg3: memref<2x128xf32, #tpu.memory_space<vmem>>) attributes {dimension_semantics = [], scalar_prefetch = 0 : i64, scratch_operands = 0 : i64, tpu.core_type = #tpu.core_type<tc>} {
    %c0 = arith.constant 0 : index
    %c0_0 = arith.constant 0 : index
    %0 = vector.load %arg2[%c0, %c0_0] : memref<128x128xf32, #tpu.memory_space<vmem>>, vector<72x8xf32>
    %c72 = arith.constant 72 : index
    %c0_1 = arith.constant 0 : index
    %1 = vector.load %arg2[%c72, %c0_1] : memref<128x128xf32, #tpu.memory_space<vmem>>, vector<16x32xf32>
    %c88 = arith.constant 88 : index
    %c0_2 = arith.constant 0 : index
    %2 = vector.load %arg2[%c88, %c0_2] : memref<128x128xf32, #tpu.memory_space<vmem>>, vector<32x128xf32>
    %c120 = arith.constant 120 : index
    %c0_3 = arith.constant 0 : index
    %3 = vector.load %arg2[%c120, %c0_3] : memref<128x128xf32, #tpu.memory_space<vmem>>, vector<2x128xf32>
    %4 = vector.extract_strided_slice %3 {offsets = [0, 0], sizes = [1, 32], strides = [1, 1]} : vector<2x128xf32> to vector<1x32xf32>
    %5 = vector.extract_strided_slice %3 {offsets = [1, 0], sizes = [1, 128], strides = [1, 1]} : vector<2x128xf32> to vector<1x128xf32>
    %c0_4 = arith.constant 0 : index
    %c0_5 = arith.constant 0 : index
    %6 = vector.load %arg1[%c0_4, %c0_5] : memref<8x256xf32, #tpu.memory_space<vmem>>, vector<8x256xf32>
    %cst = arith.constant dense<0.000000e+00> : vector<72x256xf32>
    %7 = tpu.matmul %0, %6, %cst {dimension_numbers = #tpu.dot_dimension_numbers<[1], [0], [0], [1], [0, 0, 1, 1], [], []>} : vector<72x8xf32>, vector<8x256xf32>, vector<72x256xf32> -> vector<72x256xf32>
    %8 = vector.extract_strided_slice %7 {offsets = [0, 0], sizes = [64, 256], strides = [1, 1]} : vector<72x256xf32> to vector<64x256xf32>
    %9 = vector.extract_strided_slice %7 {offsets = [64, 0], sizes = [2, 256], strides = [1, 1]} : vector<72x256xf32> to vector<2x256xf32>
    %cst_6 = arith.constant dense<0xFF800000> : vector<2xf32>
    %10 = vector.multi_reduction <maximumf>, %9, %cst_6 [1] : vector<2x256xf32> to vector<2xf32>
    %11 = vector.shape_cast %10 : vector<2xf32> to vector<2x1xf32>
    %12 = vector.broadcast %11 : vector<2x1xf32> to vector<2x256xf32>
    %13 = arith.subf %9, %12 : vector<2x256xf32>
    %14 = math.exp %13 : vector<2x256xf32>
    %cst_7 = arith.constant dense<0.000000e+00> : vector<2xf32>
    %15 = vector.multi_reduction <add>, %14, %cst_7 [1] : vector<2x256xf32> to vector<2xf32>
    %16 = vector.shape_cast %15 : vector<2xf32> to vector<2x1xf32>
    %cst_8 = arith.constant dense<0.000000e+00> : vector<2x64xf32>
    %17 = tpu.matmul %14, %8, %cst_8 {dimension_numbers = #tpu.dot_dimension_numbers<[1], [1], [0], [0], [0, 0, 1, 0], [], []>} : vector<2x256xf32>, vector<64x256xf32>, vector<2x64xf32> -> vector<2x64xf32>
    %18 = tpu.iota {dimensions = array<i32: 0>} : vector<2x32xi32>
    %19 = vector.extract_strided_slice %17 {offsets = [0, 0], sizes = [2, 32], strides = [1, 1]} : vector<2x64xf32> to vector<2x32xf32>
    %c1_i32 = arith.constant 1 : i32
    %20 = vector.broadcast %c1_i32 : i32 to vector<2x32xi32>
    %21 = arith.cmpi eq, %18, %20 : vector<2x32xi32>
    %22 = vector.extract_strided_slice %17 {offsets = [0, 32], sizes = [2, 32], strides = [1, 1]} : vector<2x64xf32> to vector<2x32xf32>
    %23 = arith.select %21, %22, %19 : vector<2x32xi1>, vector<2x32xf32>
    %c0_9 = arith.constant 0 : index
    %c0_10 = arith.constant 0 : index
    %24 = vector.load %arg0[%c0_9, %c0_10] : memref<2x16xf32, #tpu.memory_space<vmem>>, vector<2x16xf32>
    %cst_11 = arith.constant dense<0.000000e+00> : vector<2x32xf32>
    %25 = tpu.matmul %24, %1, %cst_11 {dimension_numbers = #tpu.dot_dimension_numbers<[1], [0], [0], [1], [0, 0, 1, 1], [], []>} : vector<2x16xf32>, vector<16x32xf32>, vector<2x32xf32> -> vector<2x32xf32>
    %26 = vector.broadcast %4 : vector<1x32xf32> to vector<2x32xf32>
    %27 = arith.addf %25, %26 : vector<2x32xf32>
    %28 = tpu.reciprocal %16 {approx = true} : vector<2x1xf32> -> vector<2x1xf32>
    %29 = vector.broadcast %28 : vector<2x1xf32> to vector<2x32xf32>
    %30 = arith.mulf %23, %29 : vector<2x32xf32>
    %31 = arith.addf %30, %27 : vector<2x32xf32>
    %cst_12 = arith.constant dense<0.000000e+00> : vector<2x128xf32>
    %32 = tpu.matmul %31, %2, %cst_12 {dimension_numbers = #tpu.dot_dimension_numbers<[1], [0], [0], [1], [0, 0, 1, 1], [], []>} : vector<2x32xf32>, vector<32x128xf32>, vector<2x128xf32> -> vector<2x128xf32>
    %33 = vector.broadcast %5 : vector<1x128xf32> to vector<2x128xf32>
    %34 = arith.addf %32, %33 : vector<2x128xf32>
    %c0_13 = arith.constant 0 : index
    %c0_14 = arith.constant 0 : index
    %35 = vector.load %arg3[%c0_13, %c0_14] : memref<2x128xf32, #tpu.memory_space<vmem>>, vector<2x128xf32>
    tpu.vector_store %arg3[%c0_13, %c0_14], %34 {strides = array<i32>} : memref<2x128xf32, #tpu.memory_space<vmem>>, vector<2x128xf32>,
    return
  }
}

</mosaic_0001>

<llo_original>
// kernel: itmbf_forward.1
$region0: #{itmbf_forward.1}
  #allocation0 [shape = 'u32[]', space=smem, size = 0x4, offset = 0x4, fixed_abs, tag = 'smem constant byte address 0x4 - core index']
  #allocation1 [shape = 'u32[144,128]{1,0:T(1,128)}', space=vmem, size = 0x12000, scoped, tag = 'internal scratch']
  %s0 = inlined_call_operand.vmem [shape: f32[2,16], index: 0, kind: input, shape index: {}]
  %s1 = inlined_call_operand.vmem [shape: f32[8,256], index: 1, kind: input, shape index: {}]
  %s2 = inlined_call_operand.vmem [shape: f32[128,128], index: 2, kind: input, shape index: {}]
  %s3 = inlined_call_operand.hbm [shape: f32[2,128], index: 3, kind: output, shape index: {}]
  %s4 = sld [smem:[#allocation0]]
  $region22: #{itmbf_forward.1} parent=0
    _
  %s6 = ssub.s32 1, %s4
  %s7 = scalar_select 0, %s6, %s4
  $region1: #{itmbf_forward.1} parent=0
    #allocation2 [shape = 'u8[1024]{0}', space=vmem, size = 0x400, scoped, tag = 'output window, operand 0, single buffered']
    #allocation3 [shape = 's32[1]{0}', space=sflag, size = 0x4, scoped, tag = 'scoped memory for itmbf_forward.1']
    %8 = vsyncpa [#allocation3], 0
    // Predicated region
    $region2: #{itmbf_forward.1} parent=1 // pred_check
      _
    $region3: #{itmbf_forward.1} parent=1 // pred_check_branch
      %10 = sbr.rel (0) target = $region5
    $region4: #{itmbf_forward.1} parent=1 // pred_region
      _
    $region5: #{itmbf_forward.1} parent=1 // pred_fallthru
      _
    // Predicated region
    $region6: #{itmbf_forward.1} parent=1 // pred_check
      _
    $region7: #{itmbf_forward.1} parent=1 // pred_check_branch
      %12 = sbr.rel (0) target = $region9
    $region8: #{itmbf_forward.1} parent=1 // pred_region
      _
    $region9: #{itmbf_forward.1} parent=1 // pred_fallthru
      _
    // Predicated region
    $region10: #{itmbf_forward.1} parent=1 // pred_check
      _
    $region11: #{itmbf_forward.1} parent=1 // pred_check_branch
      %14 = sbr.rel (0) target = $region13
    $region12: #{itmbf_forward.1} parent=1 // pred_region
      _
    $region13: #{itmbf_forward.1} parent=1 // pred_fallthru
      _
    %v15 = vld [vmem:[%s2] sm:$0xff]
    %v16 = vld [vmem:[%s2 + $0x8] sm:$0xff]
    %v17 = vld [vmem:[%s2 + $0x10] sm:$0xff]
    %v18 = vld [vmem:[%s2 + $0x18] sm:$0xff]
    %v19 = vld [vmem:[%s2 + $0x20] sm:$0xff]
    %v20 = vld [vmem:[%s2 + $0x28] sm:$0xff]
    %v21 = vld [vmem:[%s2 + $0x30] sm:$0xff]
    %v22 = vld [vmem:[%s2 + $0x38] sm:$0xff]
    %v23 = vld [vmem:[%s2 + $0x40] sm:$0xff]
    %v24 = vld [vmem:[%s2 + $0x48] sm:$0xff]
    %v25 = vld [vmem:[%s2 + $0x50] sm:$0xff]
    %v26 = vld [vmem:[%s2 + $0x58] sm:$0xff]
    %v27 = vld [vmem:[%s2 + $0x60] sm:$0xff]
    %v28 = vld [vmem:[%s2 + $0x68] sm:$0xff]
    %v29 = vld [vmem:[%s2 + $0x70] sm:$0xff]
    %v30 = vld [vmem:[%s2 + $0x78] sm:$0x3]
    %v31 = vld [vmem:[%s1] sm:$0xff]
    %v32 = vld [vmem:[%s1 + $0x8] sm:$0xff]
    %vm33 = vcmask 64512
    %v35 = vsel %vm33, %v15, 0
    %v38 = vsel %vm33, %v16, 0
    %v41 = vsel %vm33, %v17, 0
    %v44 = vsel %vm33, %v18, 0
    %v47 = vsel %vm33, %v19, 0
    %v50 = vsel %vm33, %v20, 0
    %v53 = vsel %vm33, %v21, 0
    %v56 = vsel %vm33, %v22, 0
    %v59 = vsel %vm33, %v23, 0
    %61 = vmatprep.subr.mxu0 0.0
    %62 = vmatpush1.msra.mxu0 0.0
    %63 = vmatprep.subr.mxu0 0.0
    %64 = vmatpush1.msra.mxu0 0.0
    %65 = vmatprep.subr.mxu0 0.0
    %66 = vmatpush1.msra.mxu0 0.0
    %67 = vmatprep.subr.mxu0 0.0
    %68 = vmatpush1.msra.mxu0 0.0
    %69 = vmatprep.subr.mxu0 0.0
    %70 = vmatpush1.msra.mxu0 0.0
    %71 = vmatprep.subr.mxu0 0.0
    %72 = vmatpush1.msra.mxu0 0.0
    %73 = vmatprep.subr.mxu0 0.0
    %74 = vmatpush1.msra.mxu0 0.0
    %75 = vmatprep.subr.mxu0 0.0
    %76 = vmatpush1.msra.mxu0 0.0
    %77 = vmatprep.subr.mxu0 0.0
    %78 = vmatpush1.msra.mxu0 0.0
    %79 = vmatprep.subr.mxu0 0.0
    %80 = vmatpush1.msra.mxu0 0.0
    %81 = vmatprep.subr.mxu0 0.0
    %82 = vmatpush1.msra.mxu0 0.0
    %83 = vmatprep.subr.mxu0 0.0
    %84 = vmatpush1.msra.mxu0 0.0
    %85 = vmatprep.subr.mxu0 0.0
    %86 = vmatpush1.msra.mxu0 0.0
    %87 = vmatprep.subr.mxu0 0.0
    %88 = vmatpush1.msra.mxu0 0.0
    %89 = vmatprep.subr.mxu0 0.0
    %90 = vmatpush1.msra.mxu0 0.0
    %91 = vmatprep.subr.mxu0 %v32
    %92 = vmatpush1.msra.mxu0 %v31
    %93 = vmatprep.subr.mxu0 0.0
    %94 = vmatpush2.msra.mxu0 0.0
    %95 = vmatprep.subr.mxu0 0.0
    %96 = vmatpush2.msra.mxu0 0.0
    %97 = vmatprep.subr.mxu0 0.0
    %98 = vmatpush2.msra.mxu0 0.0
    %99 = vmatprep.subr.mxu0 0.0
    %100 = vmatpush2.msra.mxu0 0.0
    %101 = vmatprep.subr.mxu0 0.0
    %102 = vmatpush2.msra.mxu0 0.0
    %103 = vmatprep.subr.mxu0 0.0
    %104 = vmatpush2.msra.mxu0 0.0
    %105 = vmatprep.subr.mxu0 0.0
    %106 = vmatpush2.msra.mxu0 0.0
    %107 = vmatprep.subr.mxu0 0.0
    %108 = vmatpush2.msra.mxu0 0.0
    %109 = vmatprep.subr.mxu0 0.0
    %110 = vmatpush2.msra.mxu0 0.0
    %111 = vmatprep.subr.mxu0 0.0
    %112 = vmatpush2.msra.mxu0 0.0
    %113 = vmatprep.subr.mxu0 0.0
    %114 = vmatpush2.msra.mxu0 0.0
    %115 = vmatprep.subr.mxu0 0.0
    %116 = vmatpush2.msra.mxu0 0.0
    %117 = vmatprep.subr.mxu0 0.0
    %118 = vmatpush2.msra.mxu0 0.0
    %119 = vmatprep.subr.mxu0 0.0
    %120 = vmatpush2.msra.mxu0 0.0
    %121 = vmatprep.subr.mxu0 0.0
    %122 = vmatpush2.msra.mxu0 0.0
    %123 = vmatprep.subr.mxu0 0.0
    %124 = vmatpush2.msra.mxu0 0.0
    %125 = vmatprep.mubr.f32.mxu0 0.0
    %126 = vmatmul.mubr.f32.gmra.mxu0 %v35
    %v127 = vpop.f32.mrf.mxu0
    %v128 = vadd.f32 0.0, %v127
    %v129 = vpop.f32.mrf.mxu0
    %v130 = vadd.f32 0.0, %v129
    %131 = vmatprep.mubr.f32.mxu0 0.0
    %132 = vmatmul.mubr.f32.gmra.mxu0 %v38
    %v133 = vpop.f32.mrf.mxu0
    %v134 = vadd.f32 0.0, %v133
    %v135 = vpop.f32.mrf.mxu0
    %v136 = vadd.f32 0.0, %v135
    %137 = vmatprep.mubr.f32.mxu0 0.0
    %138 = vmatmul.mubr.f32.gmra.mxu0 %v41
    %v139 = vpop.f32.mrf.mxu0
    %v140 = vadd.f32 0.0, %v139
    %v141 = vpop.f32.mrf.mxu0
    %v142 = vadd.f32 0.0, %v141
    %143 = vmatprep.mubr.f32.mxu0 0.0
    %144 = vmatmul.mubr.f32.gmra.mxu0 %v44
    %v145 = vpop.f32.mrf.mxu0
    %v146 = vadd.f32 0.0, %v145
    %v147 = vpop.f32.mrf.mxu0
    %v148 = vadd.f32 0.0, %v147
    %149 = vmatprep.mubr.f32.mxu0 0.0
    %150 = vmatmul.mubr.f32.gmra.mxu0 %v47
    %v151 = vpop.f32.mrf.mxu0
    %v152 = vadd.f32 0.0, %v151
    %v153 = vpop.f32.mrf.mxu0
    %v154 = vadd.f32 0.0, %v153
    %155 = vmatprep.mubr.f32.mxu0 0.0
    %156 = vmatmul.mubr.f32.gmra.mxu0 %v50
    %v157 = vpop.f32.mrf.mxu0
    %v158 = vadd.f32 0.0, %v157
    %v159 = vpop.f32.mrf.mxu0
    %v160 = vadd.f32 0.0, %v159
    %161 = vmatprep.mubr.f32.mxu0 0.0
    %162 = vmatmul.mubr.f32.gmra.mxu0 %v53
    %v163 = vpop.f32.mrf.mxu0
    %v164 = vadd.f32 0.0, %v163
    %v165 = vpop.f32.mrf.mxu0
    %v166 = vadd.f32 0.0, %v165
    %167 = vmatprep.mubr.f32.mxu0 0.0
    %168 = vmatmul.mubr.f32.gmra.mxu0 %v56
    %v169 = vpop.f32.mrf.mxu0
    %v170 = vadd.f32 0.0, %v169
    %v171 = vpop.f32.mrf.mxu0
    %v172 = vadd.f32 0.0, %v171
    %173 = vmatprep.mubr.f32.mxu0 0.0
    %174 = vmatmul.mubr.f32.gmra.mxu0 %v59
    %v175 = vpop.f32.mrf.mxu0
    %v176 = vadd.f32 0.0, %v175
    %v177 = vpop.f32.mrf.mxu0
    %v178 = vadd.f32 0.0, %v177
    %179 = vdwg.mxu0
    %vm180 = vcmask 1041408
    %v181 = vsel %vm180, %v176, -inf
    %v182 = vsel %vm180, %v178, -inf
    %v183 = vmax.f32 %v181, %v182
    %184 = vmax.xlane.f32.xlu0 %v183
    %v185 = vpop.xlane.xlu0 %184
    %v186 = vsub.f32 %v176, %v185
    %v187 = vsub.f32 %v178, %v185
    %v188 = vmul.f32 %v186, 1.442695
    %v189 = vpow.pop %v188
    %v190 = vmul.f32 %v187, 1.442695
    %v191 = vpow.pop %v190
    %v192 = vsel %vm180, %v189, 0.0
    %v193 = vsel %vm180, %v191, 0.0
    %v194 = vadd.f32 %v192, %v193
    %195 = vadd.xlane.f32.xlu0 %v194
    %v196 = vpop.xlane.xlu0 %195
    %197 = vmatprep.subr.mxu0 0.0
    %198 = vmatpush1.xpose.msra.mxu0 0.0
    %199 = vmatprep.subr.mxu0 0.0
    %200 = vmatpush1.xpose.msra.mxu0 0.0
    %201 = vmatprep.subr.mxu0 0.0
    %202 = vmatpush1.xpose.msra.mxu0 0.0
    %203 = vmatprep.subr.mxu0 0.0
    %204 = vmatpush1.xpose.msra.mxu0 0.0
    %205 = vmatprep.subr.mxu0 0.0
    %206 = vmatpush1.xpose.msra.mxu0 0.0
    %207 = vmatprep.subr.mxu0 0.0
    %208 = vmatpush1.xpose.msra.mxu0 0.0
    %209 = vmatprep.subr.mxu0 0.0
    %210 = vmatpush1.xpose.msra.mxu0 0.0
    %211 = vmatprep.subr.mxu0 0.0
    %212 = vmatpush1.xpose.msra.mxu0 0.0
    %213 = vmatprep.subr.mxu0 %v172
    %214 = vmatpush1.xpose.msra.mxu0 %v170
    %215 = vmatprep.subr.mxu0 %v166
    %216 = vmatpush1.xpose.msra.mxu0 %v164
    %217 = vmatprep.subr.mxu0 %v160
    %218 = vmatpush1.xpose.msra.mxu0 %v158
    %219 = vmatprep.subr.mxu0 %v154
    %220 = vmatpush1.xpose.msra.mxu0 %v152
    %221 = vmatprep.subr.mxu0 %v148
    %222 = vmatpush1.xpose.msra.mxu0 %v146
    %223 = vmatprep.subr.mxu0 %v142
    %224 = vmatpush1.xpose.msra.mxu0 %v140
    %225 = vmatprep.subr.mxu0 %v136
    %226 = vmatpush1.xpose.msra.mxu0 %v134
    %227 = vmatprep.subr.mxu0 %v130
    %228 = vmatpush1.xpose.msra.mxu0 %v128
    %229 = vmatprep.subr.mxu0 0.0
    %230 = vmatpush2.xpose.msra.mxu0 0.0
    %231 = vmatprep.subr.mxu0 0.0
    %232 = vmatpush2.xpose.msra.mxu0 0.0
    %233 = vmatprep.subr.mxu0 0.0
    %234 = vmatpush2.xpose.msra.mxu0 0.0
    %235 = vmatprep.subr.mxu0 0.0
    %236 = vmatpush2.xpose.msra.mxu0 0.0
    %237 = vmatprep.subr.mxu0 0.0
    %238 = vmatpush2.xpose.msra.mxu0 0.0
    %239 = vmatprep.subr.mxu0 0.0
    %240 = vmatpush2.xpose.msra.mxu0 0.0
    %241 = vmatprep.subr.mxu0 0.0
    %242 = vmatpush2.xpose.msra.mxu0 0.0
    %243 = vmatprep.subr.mxu0 0.0
    %244 = vmatpush2.xpose.msra.mxu0 0.0
    %245 = vmatprep.subr.mxu0 0.0
    %246 = vmatpush2.xpose.msra.mxu0 0.0
    %247 = vmatprep.subr.mxu0 0.0
    %248 = vmatpush2.xpose.msra.mxu0 0.0
    %249 = vmatprep.subr.mxu0 0.0
    %250 = vmatpush2.xpose.msra.mxu0 0.0
    %251 = vmatprep.subr.mxu0 0.0
    %252 = vmatpush2.xpose.msra.mxu0 0.0
    %253 = vmatprep.subr.mxu0 0.0
    %254 = vmatpush2.xpose.msra.mxu0 0.0
    %255 = vmatprep.subr.mxu0 0.0
    %256 = vmatpush2.xpose.msra.mxu0 0.0
    %257 = vmatprep.subr.mxu0 0.0
    %258 = vmatpush2.xpose.msra.mxu0 0.0
    %259 = vmatprep.subr.mxu0 0.0
    %260 = vmatpush2.xpose.msra.mxu0 0.0
    %261 = vmatprep.mubr.f32.mxu0 %v191
    %262 = vmatmul.mubr.f32.gmra.mxu0 %v189
    %v263 = vpop.f32.mrf.mxu0
    %v264 = vadd.f32 0.0, %v263
    %v265 = vpop.f32.mrf.mxu0
    %266 = vdwg.mxu0
    %v267 = vlaneseq
    %v268 = vshrl.u32 %v267, 7
    %vm269 = vcmp.eq.s32.totalorder %v268, 1
    %271 = vrot.lane.b32.xlu0 %v264, 32
    %v272 = vpop.permute.xlu0 %271
    %v274 = vsel %vm269, %v264, %v272
    %v275 = vld [vmem:[%s0] sm:$0x3]
    %v276 = vlaneseq
    %v277 = vshrl.u32 %v276, 7
    %v278 = vsub.s32 0, %v277
    %v279 = vrot.slane %v30, %v278
    %vm280 = vcmask 130048
    %v282 = vsel %vm280, %v275, 0
    %284 = vmatprep.subr.mxu0 0.0
    %285 = vmatpush1.msra.mxu0 0.0
    %286 = vmatprep.subr.mxu0 0.0
    %287 = vmatpush1.msra.mxu0 0.0
    %288 = vmatprep.subr.mxu0 0.0
    %289 = vmatpush1.msra.mxu0 0.0
    %290 = vmatprep.subr.mxu0 0.0
    %291 = vmatpush1.msra.mxu0 0.0
    %292 = vmatprep.subr.mxu0 0.0
    %293 = vmatpush1.msra.mxu0 0.0
    %294 = vmatprep.subr.mxu0 0.0
    %295 = vmatpush1.msra.mxu0 0.0
    %296 = vmatprep.subr.mxu0 0.0
    %297 = vmatpush1.msra.mxu0 0.0
    %298 = vmatprep.subr.mxu0 0.0
    %299 = vmatpush1.msra.mxu0 0.0
    %300 = vmatprep.subr.mxu0 0.0
    %301 = vmatpush1.msra.mxu0 0.0
    %302 = vmatprep.subr.mxu0 0.0
    %303 = vmatpush1.msra.mxu0 0.0
    %304 = vmatprep.subr.mxu0 0.0
    %305 = vmatpush1.msra.mxu0 0.0
    %306 = vmatprep.subr.mxu0 0.0
    %307 = vmatpush1.msra.mxu0 0.0
    %308 = vmatprep.subr.mxu0 0.0
    %309 = vmatpush1.msra.mxu0 0.0
    %310 = vmatprep.subr.mxu0 0.0
    %311 = vmatpush1.msra.mxu0 0.0
    %312 = vmatprep.subr.mxu0 0.0
    %313 = vmatpush1.msra.mxu0 %v25
    %314 = vmatprep.subr.mxu0 0.0
    %315 = vmatpush1.msra.mxu0 %v24
    %316 = vmatprep.subr.mxu0 0.0
    %317 = vmatpush2.msra.mxu0 0.0
    %318 = vmatprep.subr.mxu0 0.0
    %319 = vmatpush2.msra.mxu0 0.0
    %320 = vmatprep.subr.mxu0 0.0
    %321 = vmatpush2.msra.mxu0 0.0
    %322 = vmatprep.subr.mxu0 0.0
    %323 = vmatpush2.msra.mxu0 0.0
    %324 = vmatprep.subr.mxu0 0.0
    %325 = vmatpush2.msra.mxu0 0.0
    %326 = vmatprep.subr.mxu0 0.0
    %327 = vmatpush2.msra.mxu0 0.0
    %328 = vmatprep.subr.mxu0 0.0
    %329 = vmatpush2.msra.mxu0 0.0
    %330 = vmatprep.subr.mxu0 0.0
    %331 = vmatpush2.msra.mxu0 0.0
    %332 = vmatprep.subr.mxu0 0.0
    %333 = vmatpush2.msra.mxu0 0.0
    %334 = vmatprep.subr.mxu0 0.0
    %335 = vmatpush2.msra.mxu0 0.0
    %336 = vmatprep.subr.mxu0 0.0
    %337 = vmatpush2.msra.mxu0 0.0
    %338 = vmatprep.subr.mxu0 0.0
    %339 = vmatpush2.msra.mxu0 0.0
    %340 = vmatprep.subr.mxu0 0.0
    %341 = vmatpush2.msra.mxu0 0.0
    %342 = vmatprep.subr.mxu0 0.0
    %343 = vmatpush2.msra.mxu0 0.0
    %344 = vmatprep.subr.mxu0 0.0
    %345 = vmatpush2.msra.mxu0 0.0
    %346 = vmatprep.subr.mxu0 0.0
    %347 = vmatpush2.msra.mxu0 0.0
    %348 = vmatprep.mubr.f32.mxu0 0.0
    %349 = vmatmul.mubr.f32.gmra.mxu0 %v282
    %v350 = vpop.f32.mrf.mxu0
    %v351 = vadd.f32 %v279, %v350
    %v352 = vpop.f32.mrf.mxu0
    %353 = vdwg.mxu0
    %v354 = vrcp.pop %v196
    %v355 = vmul.f32 %v274, %v354
    %357 = vrot.lane.b32.xlu0 %v351, 32
    %v358 = vpop.permute.xlu0 %357
    %v360 = vadd.f32 %v355, %v358
    %v361 = vlaneseq
    %v362 = vshrl.u32 %v361, 7
    %v363 = vsub.s32 1, %v362
    %v364 = vrot.slane %v30, %v363
    %366 = vrot.lane.b32.xlu0 %v360, 96
    %v367 = vpop.permute.xlu0 %366
    %vm368 = vcmask 261120
    %v369 = vsel %vm368, %v367, 0
    %371 = vmatprep.subr.mxu0 0.0
    %372 = vmatpush1.msra.mxu0 0.0
    %373 = vmatprep.subr.mxu0 0.0
    %374 = vmatpush1.msra.mxu0 0.0
    %375 = vmatprep.subr.mxu0 0.0
    %376 = vmatpush1.msra.mxu0 0.0
    %377 = vmatprep.subr.mxu0 0.0
    %378 = vmatpush1.msra.mxu0 0.0
    %379 = vmatprep.subr.mxu0 0.0
    %380 = vmatpush1.msra.mxu0 0.0
    %381 = vmatprep.subr.mxu0 0.0
    %382 = vmatpush1.msra.mxu0 0.0
    %383 = vmatprep.subr.mxu0 0.0
    %384 = vmatpush1.msra.mxu0 0.0
    %385 = vmatprep.subr.mxu0 0.0
    %386 = vmatpush1.msra.mxu0 0.0
    %387 = vmatprep.subr.mxu0 0.0
    %388 = vmatpush1.msra.mxu0 0.0
    %389 = vmatprep.subr.mxu0 0.0
    %390 = vmatpush1.msra.mxu0 0.0
    %391 = vmatprep.subr.mxu0 0.0
    %392 = vmatpush1.msra.mxu0 0.0
    %393 = vmatprep.subr.mxu0 0.0
    %394 = vmatpush1.msra.mxu0 0.0
    %395 = vmatprep.subr.mxu0 0.0
    %396 = vmatpush1.msra.mxu0 %v29
    %397 = vmatprep.subr.mxu0 0.0
    %398 = vmatpush1.msra.mxu0 %v28
    %399 = vmatprep.subr.mxu0 0.0
    %400 = vmatpush1.msra.mxu0 %v27
    %401 = vmatprep.subr.mxu0 0.0
    %402 = vmatpush1.msra.mxu0 %v26
    %403 = vmatprep.subr.mxu0 0.0
    %404 = vmatpush2.msra.mxu0 0.0
    %405 = vmatprep.subr.mxu0 0.0
    %406 = vmatpush2.msra.mxu0 0.0
    %407 = vmatprep.subr.mxu0 0.0
    %408 = vmatpush2.msra.mxu0 0.0
    %409 = vmatprep.subr.mxu0 0.0
    %410 = vmatpush2.msra.mxu0 0.0
    %411 = vmatprep.subr.mxu0 0.0
    %412 = vmatpush2.msra.mxu0 0.0
    %413 = vmatprep.subr.mxu0 0.0
    %414 = vmatpush2.msra.mxu0 0.0
    %415 = vmatprep.subr.mxu0 0.0
    %416 = vmatpush2.msra.mxu0 0.0
    %417 = vmatprep.subr.mxu0 0.0
    %418 = vmatpush2.msra.mxu0 0.0
    %419 = vmatprep.subr.mxu0 0.0
    %420 = vmatpush2.msra.mxu0 0.0
    %421 = vmatprep.subr.mxu0 0.0
    %422 = vmatpush2.msra.mxu0 0.0
    %423 = vmatprep.subr.mxu0 0.0
    %424 = vmatpush2.msra.mxu0 0.0
    %425 = vmatprep.subr.mxu0 0.0
    %426 = vmatpush2.msra.mxu0 0.0
    %427 = vmatprep.subr.mxu0 0.0
    %428 = vmatpush2.msra.mxu0 0.0
    %429 = vmatprep.subr.mxu0 0.0
    %430 = vmatpush2.msra.mxu0 0.0
    %431 = vmatprep.subr.mxu0 0.0
    %432 = vmatpush2.msra.mxu0 0.0
    %433 = vmatprep.subr.mxu0 0.0
    %434 = vmatpush2.msra.mxu0 0.0
    %435 = vmatprep.mubr.f32.mxu0 0.0
    %436 = vmatmul.mubr.f32.gmra.mxu0 %v369
    %v437 = vpop.f32.mrf.mxu0
    %v438 = vadd.f32 %v364, %v437
    %v439 = vpop.f32.mrf.mxu0
    %440 = vdwg.mxu0
    %441 = vst [vmem:[#allocation2] sm:$0x3] %v438
    // Predicated region
    $region14: #{itmbf_forward.1} parent=1 // pred_check
      _
    $region15: #{itmbf_forward.1} parent=1 // pred_check_branch
      %443 = sbr.rel (0) target = $region17
    $region16: #{itmbf_forward.1} parent=1 // pred_region
      %s445 = ssub.s32 32, 32
      %446 = vsyncadd [#allocation3], %s445
      %s448 = sshll.u32 [#allocation2], 4
      %s449 = int_to_ptr.vmem [resolvable:$true] %s448
      %451 = dma.vmem_to_hbm [thread:$0]  %s449, 32, %s3, [#allocation3]
    $region17: #{itmbf_forward.1} parent=1 // pred_fallthru
      _
    // Predicated region
    $region18: #{itmbf_forward.1} parent=1 // pred_check
      _
    $region19: #{itmbf_forward.1} parent=1 // pred_check_branch
      %453 = sbr.rel (0) target = $region21
    $region20: #{itmbf_forward.1} parent=1 // pred_region
      %454 = dma.done [#allocation3], 32
    $region21: #{itmbf_forward.1} parent=1 // pred_fallthru
      _
    %455 = vsyncpa [#allocation3], 1

</llo_original>
